<compile_context>
chip_gen: v7x
topology: tpu7x:2x2x1
jax: 0.10.0
libtpu: 0.0.40
codegen_flags: <defaults>
</compile_context>

<pallas_src>
import jax
import jax.numpy as jnp
from jax.experimental import pallas as pl
from jax.experimental.pallas import tpu as pltpu


def _attn_ds_kernel(xg_ref, wT_ref, out_ref):
    # xg_ref : (1, P, C, tN)  one batch element, one lane tile of N patches
    # wT_ref : (C, C) f32     folded weight: (wk @ wq^T) / (P * sqrt(R))
    # out_ref: (1, C, tN)
    P = xg_ref.shape[1]
    in_dt = xg_ref.dtype
    f32 = jnp.float32
    # bf16 products on v6e/v7x when the activation is bf16; full f32 otherwise.
    prod_dt = jnp.bfloat16 if in_dt == jnp.bfloat16 else f32

    # ---- Pass 1: qin = sum_p x[p]   (AvgPool's 1/P is folded into wT) ----
    qin = xg_ref[0, 0].astype(f32)
    for p in range(1, P):
        qin = qin + xg_ref[0, p].astype(f32)                    # (C, tN) f32

    # ---- Folded 1x1 convs: one MXU matmul ----
    qk = jnp.dot(wT_ref[...].astype(prod_dt), qin.astype(prod_dt),
                 preferred_element_type=f32)                    # (C, tN) f32
    qk_p = qk.astype(prod_dt)

    # ---- Pass 2: packed per-pixel logits (P, tN) ----
    rows = []
    for p in range(P):
        prod = xg_ref[0, p].astype(prod_dt) * qk_p              # (C, tN)
        rows.append(jnp.sum(prod.astype(f32), axis=0, keepdims=True))
    logits = jnp.concatenate(rows, axis=0)                      # (P, tN) f32

    # ---- Softmax over the patch axis (axis 0), all f32, exact reciprocal ----
    m = jnp.max(logits, axis=0, keepdims=True)                  # (1, tN)
    e = jnp.exp(logits - m)                                     # (P, tN)
    denom = jnp.sum(e, axis=0, keepdims=True)                   # (1, tN)
    attn = e * (1.0 / denom)                                    # (P, tN)
    attn_p = attn.astype(prod_dt)

    # ---- Pass 3: attention-weighted sum over the patch pixels ----
    acc = (xg_ref[0, 0].astype(prod_dt) * attn_p[0:1, :]).astype(f32)
    for p in range(1, P):
        acc = acc + (xg_ref[0, p].astype(prod_dt) * attn_p[p:p + 1, :]).astype(f32)
    out_ref[0] = acc.astype(out_ref.dtype)                      # (C, tN)


def _ceil_div(a, b):
    return -(-a // b)


def _tpu_config():
    """(vmem_limit_bytes, block_budget_bytes, max_lane_tile) per generation.

    Defaults are sized for v7x (64 MiB physical VMEM, 2 TCs).  Chips with
    128 MiB VMEM (v5e / v6e) get a larger budget and larger lane tiles --
    small tiles measurably fall far short of the HBM roofline there.
    """
    vmem_limit = 32 * 1024 * 1024
    blk_budget = 8 * 1024 * 1024
    max_lanes = 2048
    try:
        info = pltpu.get_tpu_info()
        vmem_cap = getattr(info, "vmem_capacity_bytes", None)
        if vmem_cap is not None and vmem_cap >= 100 * 1024 * 1024:
            vmem_limit = 64 * 1024 * 1024
            blk_budget = 16 * 1024 * 1024
            max_lanes = 4096
    except Exception:
        pass
    return vmem_limit, blk_budget, max_lanes


def _pick_tiling(N, B, P, C, itemsize, blk_budget, max_lanes):
    """Choose (tN, N_pad): 128-aligned lane tile and padded N (multiple of tN)."""
    # VMEM bytes per lane of N in one grid step: double-buffered input/output
    # blocks plus the kernel's f32 temporaries (qin, qk, logits, e/attn, acc).
    per_lane = (2 * P * C * itemsize        # xg block (double buffered)
                + 2 * C * itemsize          # out block (double buffered)
                + (2 * C + 2 * P + 8) * 4)  # f32 temporaries
    cap = max(128, min(max_lanes, (blk_budget // per_lane) // 128 * 128))
    if N <= cap:
        # Single tile along N: a full-extent block is always layout-legal.
        if B == 1 and N >= 256 and N % 256 == 0:
            return N // 2, N          # >= 2 grid steps so both TCs get work
        return N, N
    k = _ceil_div(N, cap)                         # number of lane tiles
    tN = _ceil_div(_ceil_div(N, k), 128) * 128    # balanced, 128-aligned, <= cap
    return tN, k * tN


def attention_downsample(x, wq, wk, downscale):
    """x: [B, C, H, W] (NCHW).  wq, wk: [C, R] 1x1-conv weights (no bias).
    Returns [B, C, H//S, W//S] (eval-mode forward of AttentionDownSample)."""
    S = int(downscale)
    B, C, H, W = x.shape
    h, w = H // S, W // S
    N, P = h * w, S * S
    R = wq.shape[1]

    # NCHW -> lane-dense grid layout [B, P, C, N]; the patch-pixel order
    # p = sh*S + sw matches ConverToGrid's permute([0,1,2,4,3,5]).
    # (In the full model, fuse this relayout into the producer of x.)
    xg = x.reshape(B, C, h, S, w, S)
    xg = jnp.transpose(xg, (0, 3, 5, 1, 2, 4)).reshape(B, P, C, N)

    # Fold the two 1x1 convs, the 1/sqrt(R) scale and the AvgPool 1/P into a
    # single (C, C) matrix so the kernel does exactly one matmul:
    #   qk = wT @ (sum_p x_p),  wT[c, c'] = sum_r wk[c, r] wq[c', r] / (P*sqrt(R))
    wT = (jnp.dot(wq.astype(jnp.float32), wk.astype(jnp.float32).T).T
          / (float(R) ** 0.5) / float(P))

    vmem_limit, blk_budget, max_lanes = _tpu_config()
    tN, N_pad = _pick_tiling(N, B, P, C, jnp.dtype(x.dtype).itemsize,
                             blk_budget, max_lanes)
    if N_pad > N:
        # Zero padding is numerically safe: padded lanes produce finite
        # (all-zero) outputs and are sliced off below.
        xg = jnp.pad(xg, ((0, 0), (0, 0), (0, 0), (0, N_pad - N)))

    grid = (B, N_pad // tN)
    out = pl.pallas_call(
        _attn_ds_kernel,
        out_shape=jax.ShapeDtypeStruct((B, C, N_pad), x.dtype),
        grid=grid,
        in_specs=[
            pl.BlockSpec((1, P, C, tN), lambda b, n: (b, 0, 0, n)),
            pl.BlockSpec((C, C), lambda b, n: (0, 0)),
        ],
        out_specs=pl.BlockSpec((1, C, tN), lambda b, n: (b, 0, n)),
        compiler_params=pltpu.CompilerParams(
            dimension_semantics=("parallel", "parallel"),
            vmem_limit_bytes=vmem_limit,
        ),
    )(xg, wT)

    if N_pad > N:
        out = out[:, :, :N]
    # [B, C, N] -> NCHW [B, C, h, w]  (free reshape: N = h*w row-major).
    return out.reshape(B, C, h, w)


def attention_downsample_ref(x, wq, wk, downscale):
    """Pure-JAX reference mirroring the PyTorch forward (eval mode)."""
    S = downscale
    B, C, H, W = x.shape
    h, w = H // S, W // S
    R = wq.shape[1]
    # Q
    xp = x.reshape(B, C, h, S, w, S).mean(axis=(3, 5))                   # (B,C,h,w)
    Q = jnp.einsum("bchw,cr->brhw", xp, wq) / (R ** 0.5)
    Q = Q[..., None]                                                     # (B,R,h,w,1)
    # K
    Kc = jnp.einsum("bcHW,cr->brHW", x, wk)                              # (B,R,H,W)
    K = Kc.reshape(B, R, h, S, w, S).transpose(0, 1, 2, 4, 3, 5)
    K = K.reshape(B, R, h, w, S * S)
    # V
    V = x.reshape(B, C, h, S, w, S).transpose(0, 1, 2, 4, 3, 5)
    V = V.reshape(B, C, h, w, S * S)
    attn = jax.nn.softmax(jnp.sum(Q * K, axis=1, keepdims=True), axis=-1)
    return jnp.sum(V * attn, axis=-1)                                    # (B,C,h,w)


if __name__ == "__main__":

    def run_case(key, B, C, H, W, S, R):
        kx, kq, kk = jax.random.split(key, 3)
        x = jax.random.normal(kx, (B, C, H, W), dtype=jnp.float32)
        wq = jax.random.normal(kq, (C, R), dtype=jnp.float32) * 0.1  # Conv2d(C->R,1)
        wk = jax.random.normal(kk, (C, R), dtype=jnp.float32) * 0.1  # Conv2d(C->R,1)
        out = jax.block_until_ready(attention_downsample(x, wq, wk, S))
        ref = attention_downsample_ref(x, wq, wk, S)
        assert out.shape == (B, C, H // S, W // S)
        err = float(jnp.max(jnp.abs(out - ref)))
        assert err < 1e-3, f"max abs err {err}"

    key = jax.random.PRNGKey(0)
    k1, k2 = jax.random.split(key)
    # downscale=2, in_channel=8, reduce=4 (dropout = identity at eval).
    run_case(k1, B=2, C=8, H=16, W=16, S=2, R=4)
    # downscale=4 path (P=16), batch 1.
    run_case(k2, B=1, C=8, H=24, W=40, S=4, R=4)

    print("KERNEL_OK")
</pallas_src>

<mosaic_0001>
module attributes {stable_mosaic.version = 11 : i64} {
  func.func @_attn_ds_kernel(%arg0: i32, %arg1: i32, %arg2: memref<1x4x8x64xf32, #tpu.memory_space<vmem>>, %arg3: memref<8x8xf32, #tpu.memory_space<vmem>>, %arg4: memref<1x8x64xf32, #tpu.memory_space<vmem>>) attributes {dimension_semantics = [#tpu.dimension_semantics<parallel>, #tpu.dimension_semantics<parallel>], iteration_bounds = array<i64: 2, 1>, scalar_prefetch = 0 : i64, scratch_operands = 0 : i64, tpu.core_type = #tpu.core_type<tc>, window_params = [{transform_indices = @transform_0, window_bounds = array<i64: 1, 4, 8, 64>}, {pipeline_mode = #tpu.pipeline_mode<synchronous>, transform_indices = @transform_1, window_bounds = array<i64: 8, 8>}, {transform_indices = @transform_2, window_bounds = array<i64: 1, 8, 64>}]} {
    %c0 = arith.constant 0 : index
    %c0_0 = arith.constant 0 : index
    %c0_1 = arith.constant 0 : index
    %c0_2 = arith.constant 0 : index
    %0 = vector.load %arg2[%c0, %c0_0, %c0_1, %c0_2] : memref<1x4x8x64xf32, #tpu.memory_space<vmem>>, vector<1x1x8x64xf32>
    %1 = vector.shape_cast %0 : vector<1x1x8x64xf32> to vector<8x64xf32>
    %c0_3 = arith.constant 0 : index
    %c1 = arith.constant 1 : index
    %c0_4 = arith.constant 0 : index
    %c0_5 = arith.constant 0 : index
    %2 = vector.load %arg2[%c0_3, %c1, %c0_4, %c0_5] : memref<1x4x8x64xf32, #tpu.memory_space<vmem>>, vector<1x1x8x64xf32>
    %3 = vector.shape_cast %2 : vector<1x1x8x64xf32> to vector<8x64xf32>
    %4 = arith.addf %1, %3 : vector<8x64xf32>
    %c0_6 = arith.constant 0 : index
    %c2 = arith.constant 2 : index
    %c0_7 = arith.constant 0 : index
    %c0_8 = arith.constant 0 : index
    %5 = vector.load %arg2[%c0_6, %c2, %c0_7, %c0_8] : memref<1x4x8x64xf32, #tpu.memory_space<vmem>>, vector<1x1x8x64xf32>
    %6 = vector.shape_cast %5 : vector<1x1x8x64xf32> to vector<8x64xf32>
    %7 = arith.addf %4, %6 : vector<8x64xf32>
    %c0_9 = arith.constant 0 : index
    %c3 = arith.constant 3 : index
    %c0_10 = arith.constant 0 : index
    %c0_11 = arith.constant 0 : index
    %8 = vector.load %arg2[%c0_9, %c3, %c0_10, %c0_11] : memref<1x4x8x64xf32, #tpu.memory_space<vmem>>, vector<1x1x8x64xf32>
    %9 = vector.shape_cast %8 : vector<1x1x8x64xf32> to vector<8x64xf32>
    %10 = arith.addf %7, %9 : vector<8x64xf32>
    %c0_12 = arith.constant 0 : index
    %c0_13 = arith.constant 0 : index
    %11 = vector.load %arg3[%c0_12, %c0_13] : memref<8x8xf32, #tpu.memory_space<vmem>>, vector<8x8xf32>
    %cst = arith.constant dense<0.000000e+00> : vector<8x64xf32>
    %12 = tpu.matmul %11, %10, %cst {dimension_numbers = #tpu.dot_dimension_numbers<[1], [0], [0], [1], [0, 0, 1, 1], [], []>} : vector<8x8xf32>, vector<8x64xf32>, vector<8x64xf32> -> vector<8x64xf32>
    %c0_14 = arith.constant 0 : index
    %c0_15 = arith.constant 0 : index
    %c0_16 = arith.constant 0 : index
    %c0_17 = arith.constant 0 : index
    %13 = vector.load %arg2[%c0_14, %c0_15, %c0_16, %c0_17] : memref<1x4x8x64xf32, #tpu.memory_space<vmem>>, vector<1x1x8x64xf32>
    %14 = vector.shape_cast %13 : vector<1x1x8x64xf32> to vector<8x64xf32>
    %15 = arith.mulf %14, %12 : vector<8x64xf32>
    %cst_18 = arith.constant dense<0.000000e+00> : vector<64xf32>
    %16 = vector.multi_reduction <add>, %15, %cst_18 [0] : vector<8x64xf32> to vector<64xf32>
    %17 = vector.shape_cast %16 : vector<64xf32> to vector<1x64xf32>
    %c0_19 = arith.constant 0 : index
    %c1_20 = arith.constant 1 : index
    %c0_21 = arith.constant 0 : index
    %c0_22 = arith.constant 0 : index
    %18 = vector.load %arg2[%c0_19, %c1_20, %c0_21, %c0_22] : memref<1x4x8x64xf32, #tpu.memory_space<vmem>>, vector<1x1x8x64xf32>
    %19 = vector.shape_cast %18 : vector<1x1x8x64xf32> to vector<8x64xf32>
    %20 = arith.mulf %19, %12 : vector<8x64xf32>
    %cst_23 = arith.constant dense<0.000000e+00> : vector<64xf32>
    %21 = vector.multi_reduction <add>, %20, %cst_23 [0] : vector<8x64xf32> to vector<64xf32>
    %22 = vector.shape_cast %21 : vector<64xf32> to vector<1x64xf32>
    %c0_24 = arith.constant 0 : index
    %c2_25 = arith.constant 2 : index
    %c0_26 = arith.constant 0 : index
    %c0_27 = arith.constant 0 : index
    %23 = vector.load %arg2[%c0_24, %c2_25, %c0_26, %c0_27] : memref<1x4x8x64xf32, #tpu.memory_space<vmem>>, vector<1x1x8x64xf32>
    %24 = vector.shape_cast %23 : vector<1x1x8x64xf32> to vector<8x64xf32>
    %25 = arith.mulf %24, %12 : vector<8x64xf32>
    %cst_28 = arith.constant dense<0.000000e+00> : vector<64xf32>
    %26 = vector.multi_reduction <add>, %25, %cst_28 [0] : vector<8x64xf32> to vector<64xf32>
    %27 = vector.shape_cast %26 : vector<64xf32> to vector<1x64xf32>
    %c0_29 = arith.constant 0 : index
    %c3_30 = arith.constant 3 : index
    %c0_31 = arith.constant 0 : index
    %c0_32 = arith.constant 0 : index
    %28 = vector.load %arg2[%c0_29, %c3_30, %c0_31, %c0_32] : memref<1x4x8x64xf32, #tpu.memory_space<vmem>>, vector<1x1x8x64xf32>
    %29 = vector.shape_cast %28 : vector<1x1x8x64xf32> to vector<8x64xf32>
    %30 = arith.mulf %29, %12 : vector<8x64xf32>
    %cst_33 = arith.constant dense<0.000000e+00> : vector<64xf32>
    %31 = vector.multi_reduction <add>, %30, %cst_33 [0] : vector<8x64xf32> to vector<64xf32>
    %32 = vector.shape_cast %31 : vector<64xf32> to vector<1x64xf32>
    %33 = tpu.concatenate %17, %22, %27, %32 in 0 : vector<1x64xf32>, vector<1x64xf32>, vector<1x64xf32>, vector<1x64xf32> -> vector<4x64xf32>
    %cst_34 = arith.constant dense<0xFF800000> : vector<64xf32>
    %34 = vector.multi_reduction <maximumf>, %33, %cst_34 [0] : vector<4x64xf32> to vector<64xf32>
    %35 = vector.shape_cast %34 : vector<64xf32> to vector<1x64xf32>
    %36 = vector.broadcast %35 : vector<1x64xf32> to vector<4x64xf32>
    %37 = arith.subf %33, %36 : vector<4x64xf32>
    %38 = math.exp %37 : vector<4x64xf32>
    %cst_35 = arith.constant dense<0.000000e+00> : vector<64xf32>
    %39 = vector.multi_reduction <add>, %38, %cst_35 [0] : vector<4x64xf32> to vector<64xf32>
    %40 = vector.shape_cast %39 : vector<64xf32> to vector<1x64xf32>
    %cst_36 = arith.constant 1.000000e+00 : f32
    %41 = vector.broadcast %cst_36 : f32 to vector<1x64xf32>
    %42 = arith.divf %41, %40 : vector<1x64xf32>
    %43 = vector.broadcast %42 : vector<1x64xf32> to vector<4x64xf32>
    %44 = arith.mulf %38, %43 : vector<4x64xf32>
    %c0_37 = arith.constant 0 : index
    %c0_38 = arith.constant 0 : index
    %c0_39 = arith.constant 0 : index
    %c0_40 = arith.constant 0 : index
    %45 = vector.load %arg2[%c0_37, %c0_38, %c0_39, %c0_40] : memref<1x4x8x64xf32, #tpu.memory_space<vmem>>, vector<1x1x8x64xf32>
    %46 = vector.shape_cast %45 : vector<1x1x8x64xf32> to vector<8x64xf32>
    %47 = vector.extract_strided_slice %44 {offsets = [0, 0], sizes = [1, 64], strides = [1, 1]} : vector<4x64xf32> to vector<1x64xf32>
    %48 = vector.broadcast %47 : vector<1x64xf32> to vector<8x64xf32>
    %49 = arith.mulf %46, %48 : vector<8x64xf32>
    %c0_41 = arith.constant 0 : index
    %c1_42 = arith.constant 1 : index
    %c0_43 = arith.constant 0 : index
    %c0_44 = arith.constant 0 : index
    %50 = vector.load %arg2[%c0_41, %c1_42, %c0_43, %c0_44] : memref<1x4x8x64xf32, #tpu.memory_space<vmem>>, vector<1x1x8x64xf32>
    %51 = vector.shape_cast %50 : vector<1x1x8x64xf32> to vector<8x64xf32>
    %52 = vector.extract_strided_slice %44 {offsets = [1, 0], sizes = [1, 64], strides = [1, 1]} : vector<4x64xf32> to vector<1x64xf32>
    %53 = vector.broadcast %52 : vector<1x64xf32> to vector<8x64xf32>
    %54 = arith.mulf %51, %53 : vector<8x64xf32>
    %55 = arith.addf %49, %54 : vector<8x64xf32>
    %c0_45 = arith.constant 0 : index
    %c2_46 = arith.constant 2 : index
    %c0_47 = arith.constant 0 : index
    %c0_48 = arith.constant 0 : index
    %56 = vector.load %arg2[%c0_45, %c2_46, %c0_47, %c0_48] : memref<1x4x8x64xf32, #tpu.memory_space<vmem>>, vector<1x1x8x64xf32>
    %57 = vector.shape_cast %56 : vector<1x1x8x64xf32> to vector<8x64xf32>
    %58 = vector.extract_strided_slice %44 {offsets = [2, 0], sizes = [1, 64], strides = [1, 1]} : vector<4x64xf32> to vector<1x64xf32>
    %59 = vector.broadcast %58 : vector<1x64xf32> to vector<8x64xf32>
    %60 = arith.mulf %57, %59 : vector<8x64xf32>
    %61 = arith.addf %55, %60 : vector<8x64xf32>
    %c0_49 = arith.constant 0 : index
    %c3_50 = arith.constant 3 : index
    %c0_51 = arith.constant 0 : index
    %c0_52 = arith.constant 0 : index
    %62 = vector.load %arg2[%c0_49, %c3_50, %c0_51, %c0_52] : memref<1x4x8x64xf32, #tpu.memory_space<vmem>>, vector<1x1x8x64xf32>
    %63 = vector.shape_cast %62 : vector<1x1x8x64xf32> to vector<8x64xf32>
    %64 = vector.extract_strided_slice %44 {offsets = [3, 0], sizes = [1, 64], strides = [1, 1]} : vector<4x64xf32> to vector<1x64xf32>
    %65 = vector.broadcast %64 : vector<1x64xf32> to vector<8x64xf32>
    %66 = arith.mulf %63, %65 : vector<8x64xf32>
    %67 = arith.addf %61, %66 : vector<8x64xf32>
    %c0_53 = arith.constant 0 : index
    %c0_54 = arith.constant 0 : index
    %c0_55 = arith.constant 0 : index
    %68 = vector.load %arg4[%c0_53, %c0_54, %c0_55] : memref<1x8x64xf32, #tpu.memory_space<vmem>>, vector<1x8x64xf32>
    %69 = vector.shape_cast %68 : vector<1x8x64xf32> to vector<8x64xf32>
    %70 = vector.shape_cast %67 : vector<8x64xf32> to vector<1x8x64xf32>
    tpu.vector_store %arg4[%c0_53, %c0_54, %c0_55], %70 {strides = array<i32>} : memref<1x8x64xf32, #tpu.memory_space<vmem>>, vector<1x8x64xf32>,
    return
  }
  func.func @transform_0(%arg0: i32, %arg1: i32) -> (i32, i32, i32, i32) {
    %c0_i32 = arith.constant 0 : i32
    %c0_i32_0 = arith.constant 0 : i32
    %c0_i32_1 = arith.constant 0 : i32
    return %arg0, %c0_i32, %c0_i32_0, %arg1 : i32, i32, i32, i32
  }
  func.func @transform_1(%arg0: i32, %arg1: i32) -> (i32, i32) {
    %c0_i32 = arith.constant 0 : i32
    %c0_i32_0 = arith.constant 0 : i32
    %c0_i32_1 = arith.constant 0 : i32
    return %c0_i32, %c0_i32_0 : i32, i32
  }
  func.func @transform_2(%arg0: i32, %arg1: i32) -> (i32, i32, i32) {
    %c0_i32 = arith.constant 0 : i32
    %c0_i32_0 = arith.constant 0 : i32
    return %arg0, %c0_i32, %arg1 : i32, i32, i32
  }
}

</mosaic_0001>

<llo_original>
// kernel: tpu_custom_call.1
$region0: #{tpu_custom_call.1}
  #allocation0 [shape = 'u32[]', space=smem, size = 0x4, offset = 0x4, fixed_abs, tag = 'smem constant byte address 0x4 - core index']
  #allocation1 [shape = 'u32[144,128]{1,0:T(1,128)}', space=vmem, size = 0x12000, scoped, tag = 'internal scratch']
  %s0 = inlined_call_operand.hbm [shape: f32[2,4,8,64], index: 0, kind: input, shape index: {}]
  %s1 = inlined_call_operand.hbm [shape: f32[8,8], index: 1, kind: input, shape index: {}]
  %s2 = inlined_call_operand.hbm [shape: f32[2,8,64], index: 2, kind: output, shape index: {}]
  %s3 = sld [smem:[#allocation0]]
  $region49: #{tpu_custom_call.1} parent=0
    _
  %s5 = ssub.s32 1, %s3
  %s6 = scalar_select 0, %s5, %s3
  $region1: #{tpu_custom_call.1} parent=0
    #allocation2 [shape = 'u8[32768]{0}', space=vmem, size = 0x8000, scoped, tag = 'input window, operand 0']
    #allocation3 [shape = 's32[2]{0}', space=sflag, size = 0x8, scoped, tag = 'scoped memory for tpu_custom_call.1']
    #allocation4 [shape = 's32[2]{0}', space=sflag, size = 0x8, scoped, tag = 'scoped memory for tpu_custom_call.1']
    #allocation5 [shape = 'u8[4096]{0}', space=vmem, size = 0x1000, scoped, tag = 'input window, operand 1, single buffered']
    #allocation6 [shape = 's32[1]{0}', space=sflag, size = 0x4, scoped, tag = 'scoped memory for tpu_custom_call.1']
    #allocation7 [shape = 'u8[8192]{0}', space=vmem, size = 0x2000, scoped, tag = 'output window, operand 0']
    %7 = vsyncpa [#allocation3], 0
    %s8 = scalar_lea.sflag [#allocation3], 1
    %9 = vsyncpa %s8, 0
    %10 = vsyncpa [#allocation6], 0
    %11 = vsyncpa [#allocation4], 0
    %s12 = scalar_lea.sflag [#allocation4], 1
    %13 = vsyncpa %s12, 0
    loop: start=0, step=1, limit=4
    $region2: #{tpu_custom_call.1} parent=1 // loop_pre_header
      _
    $region3: #{tpu_custom_call.1} parent=1 // loop_header
      %s15 = sphi 0, %s19
      %p16 = scmp.ge.s32.totalorder %s15, 4
      %s22 = sphi 0, %s34
      %s23 = sphi 0, %s30
      %s24 = sphi 0, %s22
      %s25 = sphi 0, %s23
      %s26 = sphi 0, %s24
      %s27 = sphi 0, %s25
      %s39 = sphi 0, %s41
      %s42 = sphi 0, %s39
      %s43 = sphi 0, %s42
      %s59 = sphi 0, %s43
      %s63 = sphi 0, %s63
      %s65 = sphi 0, %s63
      %s66 = sphi 0, %s65
      %s80 = sphi 0, %s66
      %s88 = sphi 0, %s90
      %s91 = sphi 0, %s88
      %s92 = sphi 0, %s91
      %s108 = sphi 0, %s92
    $region4: #{tpu_custom_call.1} parent=1 // loop_header_branch
      %18 = sbr.rel (%p16) target = $region8
    $region5: #{tpu_custom_call.1} parent=1 // loop_body
      %s20 = ssub.s32 %s15, 1
      %s21 = ssub.s32 %s15, 2
      %s28 = sadd.s32 1, %s23
      %p29 = scmp.ge.s32.totalorder %s28, 1
      %s30 = scalar_select %p29, 0, %s28
      %s31 = sadd.s32 1, %s22
      %s32 = scalar_select %p29, %s31, %s22
      %p33 = scmp.ge.s32.totalorder %s32, 2
      %s34 = scalar_select %p33, 0, %s32
      %s35 = ssub.s32 %s22, %s34
      %s36 = ssub.s32 %s23, %s30
      %s37 = sor.u32 %s35, %s36
      %p38 = scmp.eq.s32.totalorder %s37, 0
      %s40 = sadd.s32 %s39, 1
      %s41 = scalar_select %p38, %s39, %s40
      %p44 = pneg %p38
      %p45 = scmp.eq.s32.totalorder %s15, 1
      %p46 = por %p44, %p45
      %p47 = scmp.ne.s32.totalorder %s39, %s42
      %p48 = scmp.eq.s32.totalorder %s15, 0
      %p49 = por %p47, %p48
      %p50 = scmp.ne.s32.totalorder %s39, %s42
      %p51 = scmp.eq.s32.totalorder %s20, 1
      %p52 = por %p50, %p51
      %p53 = scmp.ne.s32.totalorder %s42, %s43
      %p54 = scmp.eq.s32.totalorder %s20, 0
      %p55 = por %p53, %p54
      %p56 = scmp.ne.s32.totalorder %s42, %s43
      %p57 = scmp.eq.s32.totalorder %s21, 1
      %p58 = por %p56, %p57
      %p60 = scmp.ne.s32.totalorder %s43, %s59
      %p61 = scmp.eq.s32.totalorder %s21, 0
      %p62 = por %p60, %p61
      %s64 = sadd.s32 %s63, 1
      %p67 = scmp.eq.s32.totalorder %s15, 1
      %p68 = scmp.ne.s32.totalorder %s63, %s65
      %p69 = scmp.eq.s32.totalorder %s15, 0
      %p70 = por %p68, %p69
      %p71 = scmp.ne.s32.totalorder %s63, %s65
      %p72 = scmp.eq.s32.totalorder %s20, 1
      %p73 = por %p71, %p72
      %p74 = scmp.ne.s32.totalorder %s65, %s66
      %p75 = scmp.eq.s32.totalorder %s20, 0
      %p76 = por %p74, %p75
      %p77 = scmp.ne.s32.totalorder %s65, %s66
      %p78 = scmp.eq.s32.totalorder %s21, 1
      %p79 = por %p77, %p78
      %p81 = scmp.ne.s32.totalorder %s66, %s80
      %p82 = scmp.eq.s32.totalorder %s21, 0
      %p83 = por %p81, %p82
      %s84 = ssub.s32 %s22, %s34
      %s85 = ssub.s32 %s23, %s30
      %s86 = sor.u32 %s84, %s85
      %p87 = scmp.eq.s32.totalorder %s86, 0
      %s89 = sadd.s32 %s88, 1
      %s90 = scalar_select %p87, %s88, %s89
      %p93 = pneg %p87
      %p94 = scmp.eq.s32.totalorder %s15, 1
      %p95 = por %p93, %p94
      %p96 = scmp.ne.s32.totalorder %s88, %s91
      %p97 = scmp.eq.s32.totalorder %s15, 0
      %p98 = por %p96, %p97
      %p99 = scmp.ne.s32.totalorder %s88, %s91
      %p100 = scmp.eq.s32.totalorder %s20, 1
      %p101 = por %p99, %p100
      %p102 = scmp.ne.s32.totalorder %s91, %s92
      %p103 = scmp.eq.s32.totalorder %s20, 0
      %p104 = por %p102, %p103
      %p105 = scmp.ne.s32.totalorder %s91, %s92
      %p106 = scmp.eq.s32.totalorder %s21, 1
      %p107 = por %p105, %p106
      %p109 = scmp.ne.s32.totalorder %s92, %s108
      %p110 = scmp.eq.s32.totalorder %s21, 0
      %p111 = por %p109, %p110
      %p112 = scmp.le.s32.totalorder 1, %s15
      %p113 = scmp.lt.s32.totalorder %s15, 3
      %p114 = pnand %p112, %p113
      %p115 = pneg %p114
      // Predicated region
      $region9: #{tpu_custom_call.1} parent=5 // pred_check
        _
      $region10: #{tpu_custom_call.1} parent=5 // pred_check_branch
        %117 = sbr.rel (%p114) target = $region12
      $region11: #{tpu_custom_call.1} parent=5 // pred_region
        %s118 = ssub.s32 %s15, 1
        // Predicated region
        $region13: #{tpu_custom_call.1} parent=11 // pred_check
          %p119 = pneg %p76
        $region14: #{tpu_custom_call.1} parent=11 // pred_check_branch
          %121 = sbr.rel (%p119) target = $region16
        $region15: #{tpu_custom_call.1} parent=11 // pred_region
          %s123 = ssub.s32 128, 128
          %124 = vsyncadd [#allocation6], %s123
          %s126 = sshll.u32 [#allocation5], 4
          %s127 = int_to_ptr.vmem [resolvable:$true] %s126
          %129 = dma.hbm_to_vmem [thread:$0]  %s1, 128, %s127, [#allocation6]
        $region16: #{tpu_custom_call.1} parent=11 // pred_fallthru
          _
      $region12: #{tpu_custom_call.1} parent=5 // pred_fallthru
        _
      %p130 = scmp.lt.s32.totalorder %s15, 2
      // Predicated region
      $region17: #{tpu_custom_call.1} parent=5 // pred_check
        %p131 = pneg %p130
      $region18: #{tpu_custom_call.1} parent=5 // pred_check_branch
        %133 = sbr.rel (%p131) target = $region20
      $region19: #{tpu_custom_call.1} parent=5 // pred_region
        // Predicated region
        $region21: #{tpu_custom_call.1} parent=19 // pred_check
          %p134 = pneg %p49
        $region22: #{tpu_custom_call.1} parent=19 // pred_check_branch
          %136 = sbr.rel (%p134) target = $region24
        $region23: #{tpu_custom_call.1} parent=19 // pred_region
          %s137 = sand.u32 %s39, 1
          %s138 = scalar_lea.sflag [#allocation3], %s137
          %s139 = sand.u32 %s39, 1
          %s140 = smul.addr %s139, 32
          %s141 = scalar_lea.vmem [#allocation2], %s140
          %s143 = ssub.s32 512, 512
          %144 = vsyncadd %s138, %s143
          %s145 = smul.addr %s22, 4
          %s146 = sadd.s32 %s23, %s145
          %s147 = smul.addr %s146, 128
          %s148 = scalar_lea.hbm %s0, %s147
          %s149 = sshll.u32 %s141, 4
          %s150 = int_to_ptr.vmem [resolvable:$true] %s149
          %155 = dma.hbm_to_vmem [thread:$0]  %s148, 512, %s150, %s138, 128, 128, 8
        $region24: #{tpu_custom_call.1} parent=19 // pred_fallthru
          _
      $region20: #{tpu_custom_call.1} parent=5 // pred_fallthru
        _
      %p156 = scmp.le.s32.totalorder 1, %s15
      %p157 = scmp.lt.s32.totalorder %s15, 3
      %p158 = pnand %p156, %p157
      %p159 = pneg %p158
      // Predicated region
      $region25: #{tpu_custom_call.1} parent=5 // pred_check
        _
      $region26: #{tpu_custom_call.1} parent=5 // pred_check_branch
        %161 = sbr.rel (%p158) target = $region28
      $region27: #{tpu_custom_call.1} parent=5 // pred_region
        %s162 = ssub.s32 %s15, 1
        %s163 = sand.u32 %s42, 1
        %s164 = scalar_lea.sflag [#allocation3], %s163
        %s165 = sand.u32 %s42, 1
        %s166 = smul.addr %s165, 32
        %s167 = scalar_lea.vmem [#allocation2], %s166
        // Predicated region
        $region29: #{tpu_custom_call.1} parent=27 // pred_check
          %p168 = pneg %p55
        $region30: #{tpu_custom_call.1} parent=27 // pred_check_branch
          %170 = sbr.rel (%p168) target = $region32
        $region31: #{tpu_custom_call.1} parent=27 // pred_region
          %171 = dma.done %s164, 512
        $region32: #{tpu_custom_call.1} parent=27 // pred_fallthru
          _
        // Predicated region
        $region33: #{tpu_custom_call.1} parent=27 // pred_check
          %p172 = pneg %p76
        $region34: #{tpu_custom_call.1} parent=27 // pred_check_branch
          %174 = sbr.rel (%p172) target = $region36
        $region35: #{tpu_custom_call.1} parent=27 // pred_region
          %175 = dma.done [#allocation6], 128
        $region36: #{tpu_custom_call.1} parent=27 // pred_fallthru
          _
        %s176 = sand.u32 %s42, 1
        %s177 = scalar_lea.sflag [#allocation3], %s176
        %s178 = sand.u32 %s42, 1
        %s179 = smul.addr %s178, 32
        %s180 = scalar_lea.vmem [#allocation2], %s179
        %p181 = pneg %p55
        %p182 = pneg %p52
        %p183 = pneg %p76
        %p184 = pneg %p73
        %p185 = pneg %p104
        %p186 = pneg %p101
        %s187 = sand.u32 %s91, 1
        %s188 = scalar_lea.sflag [#allocation4], %s187
        %s189 = sand.u32 %s91, 1
        %s190 = smul.addr %s189, 8
        %s191 = scalar_lea.vmem [#allocation7], %s190
        %v192 = vld [vmem:[%s167] sm:$0xff]
        %s193 = scalar_lea.vmem %s167, 8 [#allocation2]
        %v194 = vld [vmem:[%s193] sm:$0xff]
        %v195 = vadd.f32 %v192, %v194
        %s196 = scalar_lea.vmem %s167, 16 [#allocation2]
        %v197 = vld [vmem:[%s196] sm:$0xff]
        %v198 = vadd.f32 %v195, %v197
        %s199 = scalar_lea.vmem %s167, 24 [#allocation2]
        %v200 = vld [vmem:[%s199] sm:$0xff]
        %v201 = vadd.f32 %v198, %v200
        %v202 = vld [vmem:[#allocation5] sm:$0xff]
        %vm203 = vcmask 64512
        %v205 = vsel %vm203, %v202, 0
        %207 = vmatprep.subr.mxu0 0.0
        %208 = vmatpush1.msra.mxu0 %v201
        %209 = vmatprep.subr.mxu0 0.0
        %210 = vmatpush1.msra.mxu0 0.0
        %211 = vmatprep.subr.mxu0 0.0
        %212 = vmatpush1.msra.mxu0 0.0
        %213 = vmatprep.subr.mxu0 0.0
        %214 = vmatpush1.msra.mxu0 0.0
        %215 = vmatprep.subr.mxu0 0.0
        %216 = vmatpush1.msra.mxu0 0.0
        %217 = vmatprep.subr.mxu0 0.0
        %218 = vmatpush1.msra.mxu0 0.0
        %219 = vmatprep.subr.mxu0 0.0
        %220 = vmatpush1.msra.mxu0 0.0
        %221 = vmatprep.subr.mxu0 0.0
        %222 = vmatpush1.msra.mxu0 0.0
        %223 = vmatprep.subr.mxu0 0.0
        %224 = vmatpush1.msra.mxu0 0.0
        %225 = vmatprep.subr.mxu0 0.0
        %226 = vmatpush1.msra.mxu0 0.0
        %227 = vmatprep.subr.mxu0 0.0
        %228 = vmatpush1.msra.mxu0 0.0
        %229 = vmatprep.subr.mxu0 0.0
        %230 = vmatpush1.msra.mxu0 0.0
        %231 = vmatprep.subr.mxu0 0.0
        %232 = vmatpush1.msra.mxu0 0.0
        %233 = vmatprep.subr.mxu0 0.0
        %234 = vmatpush1.msra.mxu0 0.0
        %235 = vmatprep.subr.mxu0 0.0
        %236 = vmatpush1.msra.mxu0 0.0
        %237 = vmatprep.subr.mxu0 0.0
        %238 = vmatpush1.msra.mxu0 0.0
        %239 = vmatprep.subr.mxu0 0.0
        %240 = vmatpush1.msra.mxu0 0.0
        %241 = vmatprep.subr.mxu0 0.0
        %242 = vmatpush1.msra.mxu0 0.0
        %243 = vmatprep.subr.mxu0 0.0
        %244 = vmatpush1.msra.mxu0 0.0
        %245 = vmatprep.subr.mxu0 0.0
        %246 = vmatpush1.msra.mxu0 0.0
        %247 = vmatprep.subr.mxu0 0.0
        %248 = vmatpush1.msra.mxu0 0.0
        %249 = vmatprep.subr.mxu0 0.0
        %250 = vmatpush1.msra.mxu0 0.0
        %251 = vmatprep.subr.mxu0 0.0
        %252 = vmatpush1.msra.mxu0 0.0
        %253 = vmatprep.subr.mxu0 0.0
        %254 = vmatpush1.msra.mxu0 0.0
        %255 = vmatprep.subr.mxu0 0.0
        %256 = vmatpush1.msra.mxu0 0.0
        %257 = vmatprep.subr.mxu0 0.0
        %258 = vmatpush1.msra.mxu0 0.0
        %259 = vmatprep.subr.mxu0 0.0
        %260 = vmatpush1.msra.mxu0 0.0
        %261 = vmatprep.subr.mxu0 0.0
        %262 = vmatpush1.msra.mxu0 0.0
        %263 = vmatprep.subr.mxu0 0.0
        %264 = vmatpush1.msra.mxu0 0.0
        %265 = vmatprep.subr.mxu0 0.0
        %266 = vmatpush1.msra.mxu0 0.0
        %267 = vmatprep.subr.mxu0 0.0
        %268 = vmatpush1.msra.mxu0 0.0
        %269 = vmatprep.subr.mxu0 0.0
        %270 = vmatpush1.msra.mxu0 0.0
        %271 = vmatprep.mubr.f32.mxu0 0.0
        %272 = vmatmul.mubr.f32.gmra.mrb[0].mxu0 %v205
        %v273 = vpop.f32.mrb[0].mxu0
        %v274 = vadd.f32 0.0, %v273
        %v275 = vpop.f32.mrb[0].mxu0
        %276 = vdwg.mxu0
        %v277 = vmul.f32 %v192, %v274
        %vm278 = vcmask 523264
        %v279 = vsel %vm278, %v277, 0.0
        %v280 = vrot.slane %v279, 4
        %v281 = vadd.f32 %v279, %v280
        %v282 = vrot.slane %v281, 2
        %v283 = vadd.f32 %v281, %v282
        %v284 = vrot.slane %v283, 1
        %v285 = vadd.f32 %v283, %v284
        %v286 = vmul.f32 %v194, %v274
        %v287 = vsel %vm278, %v286, 0.0
        %v288 = vrot.slane %v287, 4
        %v289 = vadd.f32 %v287, %v288
        %v290 = vrot.slane %v289, 2
        %v291 = vadd.f32 %v289, %v290
        %v292 = vrot.slane %v291, 1
        %v293 = vadd.f32 %v291, %v292
        %v294 = vmul.f32 %v197, %v274
        %v295 = vsel %vm278, %v294, 0.0
        %v296 = vrot.slane %v295, 4
        %v297 = vadd.f32 %v295, %v296
        %v298 = vrot.slane %v297, 2
        %v299 = vadd.f32 %v297, %v298
        %v300 = vrot.slane %v299, 1
        %v301 = vadd.f32 %v299, %v300
        %v302 = vmul.f32 %v200, %v274
        %v303 = vsel %vm278, %v302, 0.0
        %v304 = vrot.slane %v303, 4
        %v305 = vadd.f32 %v303, %v304
        %v306 = vrot.slane %v305, 2
        %v307 = vadd.f32 %v305, %v306
        %v308 = vrot.slane %v307, 1
        %v309 = vadd.f32 %v307, %v308
        %vm310 = vcmask 1040384
        %v311 = vsel %vm310, %v285, %v293
        %vm312 = vcmask 1041408
        %v313 = vsel %vm312, %v311, %v301
        %vm314 = vcmask 1042432
        %v315 = vsel %vm314, %v313, %v309
        %vm316 = vcmask 519168
        %v317 = vsel %vm316, %v315, -inf
        %v318 = vrot.slane %v317, 4
        %v319 = vmax.f32 %v317, %v318
        %v320 = vrot.slane %v319, 2
        %v321 = vmax.f32 %v319, %v320
        %v322 = vrot.slane %v321, 1
        %v323 = vmax.f32 %v321, %v322
        %v324 = vsub.f32 %v315, %v323
        %v325 = vmul.f32 %v324, 1.442695
        %v326 = vpow.pop %v325
        %v327 = vsel %vm316, %v326, 0.0
        %v328 = vrot.slane %v327, 4
        %v329 = vadd.f32 %v327, %v328
        %v330 = vrot.slane %v329, 2
        %v331 = vadd.f32 %v329, %v330
        %v332 = vrot.slane %v331, 1
        %v333 = vadd.f32 %v331, %v332
        %v334 = vrcp.pop %v333
        %v335 = vmul.f32 1.0, %v334
        %v336 = vmul.f32 %v326, %v335
        %v337 = vlaneseq
        %v338 = vshrl.u32 %v337, 7
        %v339 = vsub.s32 0, %v338
        %v340 = vrot.slane %v336, %v339
        %v341 = vmul.f32 %v192, %v340
        %v342 = vlaneseq
        %v343 = vshrl.u32 %v342, 7
        %v344 = vsub.s32 1, %v343
        %v345 = vrot.slane %v336, %v344
        %v346 = vmul.f32 %v194, %v345
        %v347 = vadd.f32 %v341, %v346
        %v348 = vlaneseq
        %v349 = vshrl.u32 %v348, 7
        %v350 = vsub.s32 2, %v349
        %v351 = vrot.slane %v336, %v350
        %v352 = vmul.f32 %v197, %v351
        %v353 = vadd.f32 %v347, %v352
        %v354 = vlaneseq
        %v355 = vshrl.u32 %v354, 7
        %v356 = vsub.s32 3, %v355
        %v357 = vrot.slane %v336, %v356
        %v358 = vmul.f32 %v200, %v357
        %v359 = vadd.f32 %v353, %v358
        %360 = vst.msk [vmem:[%s191] sm:$0xff] %vm278, %v359
        %s361 = sand.u32 %s91, 1
        %s362 = scalar_lea.sflag [#allocation4], %s361
        %s363 = sand.u32 %s91, 1
        %s364 = smul.addr %s363, 8
        %s365 = scalar_lea.vmem [#allocation7], %s364
        // Predicated region
        $region37: #{tpu_custom_call.1} parent=27 // pred_check
          %p366 = pneg %p101
        $region38: #{tpu_custom_call.1} parent=27 // pred_check_branch
          %368 = sbr.rel (%p366) target = $region40
        $region39: #{tpu_custom_call.1} parent=27 // pred_region
          %s370 = ssub.s32 128, 128
          %371 = vsyncadd %s362, %s370
          %s372 = sadd.s32 %s25, %s24
          %s373 = smul.addr %s372, 128
          %s374 = scalar_lea.hbm %s2, %s373
          %s376 = sshll.u32 %s365, 4
          %s377 = int_to_ptr.vmem [resolvable:$true] %s376
          %379 = dma.vmem_to_hbm [thread:$0]  %s377, 128, %s374, %s362
        $region40: #{tpu_custom_call.1} parent=27 // pred_fallthru
          _
      $region28: #{tpu_custom_call.1} parent=5 // pred_fallthru
        _
      %p380 = scmp.le.s32.totalorder 2, %s15
      // Predicated region
      $region41: #{tpu_custom_call.1} parent=5 // pred_check
        %p381 = pneg %p380
      $region42: #{tpu_custom_call.1} parent=5 // pred_check_branch
        %383 = sbr.rel (%p381) target = $region44
      $region43: #{tpu_custom_call.1} parent=5 // pred_region
        %s384 = ssub.s32 %s15, 2
        // Predicated region
        $region45: #{tpu_custom_call.1} parent=43 // pred_check
          %p385 = pneg %p107
        $region46: #{tpu_custom_call.1} parent=43 // pred_check_branch
          %387 = sbr.rel (%p385) target = $region48
        $region47: #{tpu_custom_call.1} parent=43 // pred_region
          %s388 = sand.u32 %s92, 1
          %s389 = scalar_lea.sflag [#allocation4], %s388
          %s390 = sand.u32 %s92, 1
          %s391 = smul.addr %s390, 8
          %s392 = scalar_lea.vmem [#allocation7], %s391
          %393 = dma.done %s389, 128
        $region48: #{tpu_custom_call.1} parent=43 // pred_fallthru
          _
      $region44: #{tpu_custom_call.1} parent=5 // pred_fallthru
        _
    $region6: #{tpu_custom_call.1} parent=1 // loop_footer
      %s19 = sadd.s32 1, %s15
    $region7: #{tpu_custom_call.1} parent=1 // loop_footer_branch
      %14 = sbr.rel target = $region3
    $region8: #{tpu_custom_call.1} parent=1 // loop_exit
      _
    %394 = vsyncpa [#allocation3], 1
    %s395 = scalar_lea.sflag [#allocation3], 1
    %396 = vsyncpa %s395, 1
    %397 = vsyncpa [#allocation6], 1
    %398 = vsyncpa [#allocation4], 1
    %s399 = scalar_lea.sflag [#allocation4], 1
    %400 = vsyncpa %s399, 1

</llo_original>
